<compile_context>
chip_gen: v7x
topology: tpu7x:2x2x1
jax: 0.10.0
libtpu: 0.0.40
codegen_flags: <defaults>
</compile_context>

<pallas_src>
import jax
import jax.numpy as jnp
from jax import lax
from jax.experimental import pallas as pl
from jax.experimental.pallas import tpu as pltpu


# --------------------------------------------------------------------------- #
# Kernels
# --------------------------------------------------------------------------- #

def _normal_w_fixed_kernel(x_ref, o_ref):
    """Fixed taps (0,-1,1): out[h] = x[min(h+1,H-1)] - x[h].

    Layout-agnostic: works on any (1, H, lanes) block (direct or fused path).
    Computed in the input dtype (bf16 stays bf16 on v6e/v7x).
    """
    x = x_ref[0]                                   # (H, TL)
    H = x.shape[0]
    rows = lax.broadcasted_iota(jnp.int32, (H, 1), 0)
    # XLU sublane rotation: x_up[h] = x[(h+1) mod H]; fix the bottom wrap row
    # to x itself -> replicate padding (also handles H == 1 correctly).
    x_up = pltpu.roll(x, shift=H - 1, axis=0)
    x_up = jnp.where(rows == H - 1, x, x_up)
    o_ref[0] = (x_up - x).astype(o_ref.dtype)


def _make_generic_smem_kernel(C):
    """Generic 3-tap kernel; per-channel taps read as scalars from SMEM."""

    def kernel(w_ref, x_ref, o_ref):
        c = pl.program_id(0) % C                   # channel for this grid step
        w0 = w_ref[c, 0]
        w1 = w_ref[c, 1]
        w2 = w_ref[c, 2]

        x = x_ref[0].astype(jnp.float32)           # (H, TW)
        H = x.shape[0]
        rows = lax.broadcasted_iota(jnp.int32, (H, 1), 0)
        x_dn = pltpu.roll(x, shift=1, axis=0)      # x_dn[h] = x[(h-1) mod H]
        x_up = pltpu.roll(x, shift=H - 1, axis=0)  # x_up[h] = x[(h+1) mod H]
        x_dn = jnp.where(rows == 0, x, x_dn)       # replicate top edge
        x_up = jnp.where(rows == H - 1, x, x_up)   # replicate bottom edge
        o_ref[0] = (w0 * x_dn + w1 * x + w2 * x_up).astype(o_ref.dtype)

    return kernel


def _normal_w_fused_generic_kernel(w_ref, x_ref, o_ref):
    """Generic 3-tap kernel for the lane-fused (N, H, C*W) fallback layout.

    w_ref : VMEM (3, TL) per-lane tap vectors (channel taps broadcast over W).
    """
    x = x_ref[0].astype(jnp.float32)               # (H, TL)
    H = x.shape[0]
    w0 = w_ref[0:1, :].astype(jnp.float32)
    w1 = w_ref[1:2, :].astype(jnp.float32)
    w2 = w_ref[2:3, :].astype(jnp.float32)
    rows = lax.broadcasted_iota(jnp.int32, (H, 1), 0)
    x_dn = pltpu.roll(x, shift=1, axis=0)
    x_up = pltpu.roll(x, shift=H - 1, axis=0)
    x_dn = jnp.where(rows == 0, x, x_dn)
    x_up = jnp.where(rows == H - 1, x, x_up)
    o_ref[0] = (w0 * x_dn + w1 * x + w2 * x_up).astype(o_ref.dtype)


# --------------------------------------------------------------------------- #
# Tiling / VMEM helpers
# --------------------------------------------------------------------------- #

def _pick_lane_tile(L, H, itemsize, max_block_bytes):
    """Lane-tile width for a (1, H, L) block."""
    if L <= 128:
        return L                                   # full axis (allowed even <128)
    # Largest multiple of 128 that keeps one buffer <= max_block_bytes.
    budget = max(128, (max_block_bytes // (H * itemsize)) // 128 * 128)
    if L % 128 == 0:
        # Prefer a multiple of 128 that also DIVIDES L -> last tile not ragged
        # (avoids masked vst.msk partial stores).
        n128 = L // 128
        best = 128
        for d in range(1, n128 + 1):
            if n128 % d == 0 and d * 128 <= budget:
                best = d * 128
        return best
    # L not a multiple of 128: take the full row if affordable, else ragged
    # 128-multiple tiles (Pallas masks the boundary stores).
    if H * L * itemsize <= 2 * max_block_bytes:
        return L
    return min(budget, (L // 128) * 128)


def _vmem_limit(per_buf_bytes):
    # ~2x double-buffered input + 2x output + slack.  Clamp to a value that is
    # safe on every generation: raises v5e's 16 MiB default scoped limit, and
    # stays well under v7x's 64 MiB physical VMEM per TensorCore.
    return int(min(max(4 * per_buf_bytes + (4 << 20), 32 << 20), 48 << 20))


# --------------------------------------------------------------------------- #
# Forward paths
# --------------------------------------------------------------------------- #

def _forward_direct(x, taps, fixed, max_block_bytes):
    """Native-layout path: free reshape (N,C,H,W) -> (N*C, H, W), W on lanes."""
    N, C, H, W = x.shape
    itemsize = jnp.dtype(x.dtype).itemsize
    x2 = x.reshape(N * C, H, W)                    # no data movement

    tw = _pick_lane_tile(W, H, itemsize, max_block_bytes)
    n_w = pl.cdiv(W, tw)
    per_buf = H * tw * itemsize

    cparams = pltpu.CompilerParams(
        dimension_semantics=("parallel", "parallel"),
        vmem_limit_bytes=_vmem_limit(per_buf))
    x_spec = pl.BlockSpec((1, H, tw), lambda g, j: (g, 0, j))
    out_spec = pl.BlockSpec((1, H, tw), lambda g, j: (g, 0, j))
    out_shape = jax.ShapeDtypeStruct((N * C, H, W), x.dtype)

    if fixed:
        out2 = pl.pallas_call(
            _normal_w_fixed_kernel,
            out_shape=out_shape,
            grid=(N * C, n_w),
            in_specs=[x_spec],
            out_specs=out_spec,
            compiler_params=cparams,
        )(x2)
    else:
        out2 = pl.pallas_call(
            _make_generic_smem_kernel(C),
            out_shape=out_shape,
            grid=(N * C, n_w),
            in_specs=[
                pl.BlockSpec(memory_space=pltpu.MemorySpace.SMEM),  # taps (C,3)
                x_spec,
            ],
            out_specs=out_spec,
            compiler_params=cparams,
        )(taps, x2)

    return out2.reshape(N, C, H, W)


def _forward_fused(x, taps, fixed, max_block_bytes):
    """Fallback for narrow W (<128): fuse C*W onto the lane axis."""
    N, C, H, W = x.shape
    L = C * W
    itemsize = jnp.dtype(x.dtype).itemsize
    x_t = jnp.transpose(x, (0, 2, 1, 3)).reshape(N, H, L)

    tl = _pick_lane_tile(L, H, itemsize, max_block_bytes)
    n_lane = pl.cdiv(L, tl)
    per_buf = H * tl * itemsize

    cparams = pltpu.CompilerParams(
        dimension_semantics=("parallel", "parallel"),
        vmem_limit_bytes=_vmem_limit(per_buf))
    x_spec = pl.BlockSpec((1, H, tl), lambda n, j: (n, 0, j))
    out_spec = pl.BlockSpec((1, H, tl), lambda n, j: (n, 0, j))
    out_shape = jax.ShapeDtypeStruct((N, H, L), x.dtype)

    if fixed:
        out_t = pl.pallas_call(
            _normal_w_fixed_kernel,
            out_shape=out_shape,
            grid=(N, n_lane),
            in_specs=[x_spec],
            out_specs=out_spec,
            compiler_params=cparams,
        )(x_t)
    else:
        w_vec = jnp.repeat(taps.T, W, axis=1).astype(x.dtype)   # (3, C*W)
        out_t = pl.pallas_call(
            _normal_w_fused_generic_kernel,
            out_shape=out_shape,
            grid=(N, n_lane),
            in_specs=[
                pl.BlockSpec((3, tl), lambda n, j: (0, j)),
                x_spec,
            ],
            out_specs=out_spec,
            compiler_params=cparams,
        )(w_vec, x_t)

    return out_t.reshape(N, H, C, W).transpose(0, 2, 1, 3)


def normal_w_forward(x, weight, *, max_block_bytes=6 * 1024 * 1024):
    """x: (N, C, H, W); weight: (C, 1, 3, 1) (PyTorch layout). Returns (N, C, H, W)."""
    N, C, H, W = x.shape
    taps = jnp.asarray(weight).reshape(C, 3).astype(jnp.float32)

    # The module constructs constant (0,-1,1) taps; detect them (eagerly) and
    # take the specialized forward-difference kernel.  Under tracing this
    # check cannot be resolved, so fall back to the generic tap kernel.
    try:
        fixed = bool(jnp.all(taps == jnp.asarray([0.0, -1.0, 1.0], jnp.float32)))
    except Exception:
        fixed = False

    # Keep the lane-fused repack only when W is too narrow for dense lanes.
    use_direct = (W >= 128) or (C == 1)
    if use_direct:
        return _forward_direct(x, taps, fixed, max_block_bytes)
    return _forward_fused(x, taps, fixed, max_block_bytes)


# --------------------------------------------------------------------------- #
# Module weight + pure-JAX reference
# --------------------------------------------------------------------------- #

def make_normal_w_weight(channels):
    """Matches normal_w.__init__: [[0,-1,1]].T -> view(1,1,3,1) -> repeat(C,1,1,1)."""
    base = jnp.array([0.0, -1.0, 1.0], dtype=jnp.float32).reshape(1, 1, 3, 1)
    return jnp.tile(base, (channels, 1, 1, 1))               # (C, 1, 3, 1)


def _reference(x, weight):
    """Pure-JAX reference of the PyTorch forward (replicate pad + grouped conv)."""
    xp = jnp.pad(x, ((0, 0), (0, 0), (1, 1), (0, 0)), mode='edge')
    taps = weight[:, 0, :, 0]                                 # (C, 3)
    H = x.shape[2]
    return (taps[None, :, 0, None, None] * xp[:, :, 0:H, :]
            + taps[None, :, 1, None, None] * xp[:, :, 1:H + 1, :]
            + taps[None, :, 2, None, None] * xp[:, :, 2:H + 2, :])


# --------------------------------------------------------------------------- #
# Tests
# --------------------------------------------------------------------------- #

if __name__ == "__main__":
    key = jax.random.PRNGKey(0)

    # 1) Primary: module-default fixed taps, narrow W -> fused fallback path.
    N, C, H, W = 2, 4, 16, 16
    x = jax.random.normal(key, (N, C, H, W), dtype=jnp.float32)
    weight = make_normal_w_weight(C)
    out = jax.block_until_ready(normal_w_forward(x, weight))
    ref = _reference(x, weight)
    assert out.shape == (N, C, H, W)
    assert jnp.allclose(out, ref, atol=1e-5, rtol=1e-5), "mismatch (fused, fixed)"

    # 2) Direct path, W multiple of 128, forced into two 128-wide lane tiles.
    x2 = jax.random.normal(jax.random.PRNGKey(1), (2, 3, 16, 256), dtype=jnp.float32)
    w2 = make_normal_w_weight(3)
    out2 = jax.block_until_ready(normal_w_forward(x2, w2, max_block_bytes=8 * 1024))
    assert jnp.allclose(out2, _reference(x2, w2), atol=1e-5, rtol=1e-5), \
        "mismatch (direct, tiled W)"

    # 3) Direct path, W > 128 but not a multiple of 128 (full-row block).
    x3 = jax.random.normal(jax.random.PRNGKey(2), (1, 2, 8, 160), dtype=jnp.float32)
    w3 = make_normal_w_weight(2)
    out3 = jax.block_until_ready(normal_w_forward(x3, w3))
    assert jnp.allclose(out3, _reference(x3, w3), atol=1e-5, rtol=1e-5), \
        "mismatch (direct, full row)"

    # 4) Generic per-channel taps (non-constant weights), narrow W -> fused generic.
    C4 = 4
    taps4 = jnp.stack([jnp.arange(C4, dtype=jnp.float32) * 0.25,
                       jnp.full((C4,), -1.0, jnp.float32),
                       1.0 - jnp.arange(C4, dtype=jnp.float32) * 0.25], axis=1)
    w4 = taps4.reshape(C4, 1, 3, 1)
    x4 = jax.random.normal(jax.random.PRNGKey(3), (2, C4, 16, 16), dtype=jnp.float32)
    out4 = jax.block_until_ready(normal_w_forward(x4, w4))
    assert jnp.allclose(out4, _reference(x4, w4), atol=1e-5, rtol=1e-5), \
        "mismatch (fused, generic taps)"

    # 5) Generic per-channel taps on the direct path (SMEM scalar taps).
    C5 = 2
    taps5 = jnp.array([[0.5, -1.0, 0.5],
                       [0.0, -2.0, 2.0]], dtype=jnp.float32)
    w5 = taps5.reshape(C5, 1, 3, 1)
    x5 = jax.random.normal(jax.random.PRNGKey(4), (1, C5, 8, 128), dtype=jnp.float32)
    out5 = jax.block_until_ready(normal_w_forward(x5, w5))
    assert jnp.allclose(out5, _reference(x5, w5), atol=1e-5, rtol=1e-5), \
        "mismatch (direct, generic SMEM taps)"

    print("KERNEL_OK")
</pallas_src>

<mosaic_0001>
module attributes {stable_mosaic.version = 11 : i64} {
  func.func @_normal_w_fixed_kernel(%arg0: i32, %arg1: i32, %arg2: memref<1x16x64xf32, #tpu.memory_space<vmem>>, %arg3: memref<1x16x64xf32, #tpu.memory_space<vmem>>) attributes {dimension_semantics = [#tpu.dimension_semantics<parallel>, #tpu.dimension_semantics<parallel>], iteration_bounds = array<i64: 2, 1>, scalar_prefetch = 0 : i64, scratch_operands = 0 : i64, tpu.core_type = #tpu.core_type<tc>, window_params = [{transform_indices = @transform_0, window_bounds = array<i64: 1, 16, 64>}, {transform_indices = @transform_1, window_bounds = array<i64: 1, 16, 64>}]} {
    %c0 = arith.constant 0 : index
    %c0_0 = arith.constant 0 : index
    %c0_1 = arith.constant 0 : index
    %0 = vector.load %arg2[%c0, %c0_0, %c0_1] : memref<1x16x64xf32, #tpu.memory_space<vmem>>, vector<1x16x64xf32>
    %1 = vector.shape_cast %0 : vector<1x16x64xf32> to vector<16x64xf32>
    %2 = tpu.iota {dimensions = array<i32: 0>} : vector<16x1xi32>
    %c15_i32 = arith.constant 15 : i32
    %3 = tpu.dynamic_rotate %1 by %c15_i32 dim 0 : vector<16x64xf32>, i32 -> vector<16x64xf32>
    %c15_i32_2 = arith.constant 15 : i32
    %4 = vector.broadcast %c15_i32_2 : i32 to vector<16x1xi32>
    %5 = arith.cmpi eq, %2, %4 : vector<16x1xi32>
    %6 = vector.shape_cast %5 : vector<16x1xi1> to vector<16x1xi1>
    %7 = vector.broadcast %6 : vector<16x1xi1> to vector<16x64xi1>
    %8 = arith.select %7, %1, %3 : vector<16x64xi1>, vector<16x64xf32>
    %9 = arith.subf %8, %1 : vector<16x64xf32>
    %c0_3 = arith.constant 0 : index
    %c0_4 = arith.constant 0 : index
    %c0_5 = arith.constant 0 : index
    %10 = vector.load %arg3[%c0_3, %c0_4, %c0_5] : memref<1x16x64xf32, #tpu.memory_space<vmem>>, vector<1x16x64xf32>
    %11 = vector.shape_cast %10 : vector<1x16x64xf32> to vector<16x64xf32>
    %12 = vector.shape_cast %9 : vector<16x64xf32> to vector<1x16x64xf32>
    tpu.vector_store %arg3[%c0_3, %c0_4, %c0_5], %12 {strides = array<i32>} : memref<1x16x64xf32, #tpu.memory_space<vmem>>, vector<1x16x64xf32>,
    return
  }
  func.func @transform_0(%arg0: i32, %arg1: i32) -> (i32, i32, i32) {
    %c0_i32 = arith.constant 0 : i32
    %c0_i32_0 = arith.constant 0 : i32
    return %arg0, %c0_i32, %arg1 : i32, i32, i32
  }
  func.func @transform_1(%arg0: i32, %arg1: i32) -> (i32, i32, i32) {
    %c0_i32 = arith.constant 0 : i32
    %c0_i32_0 = arith.constant 0 : i32
    return %arg0, %c0_i32, %arg1 : i32, i32, i32
  }
}

</mosaic_0001>

<llo_original>
// kernel: tpu_custom_call.1
$region0: #{tpu_custom_call.1}
  #allocation0 [shape = 'u32[]', space=smem, size = 0x4, offset = 0x4, fixed_abs, tag = 'smem constant byte address 0x4 - core index']
  #allocation1 [shape = 'u32[144,128]{1,0:T(1,128)}', space=vmem, size = 0x12000, scoped, tag = 'internal scratch']
  %s0 = inlined_call_operand.hbm [shape: f32[2,16,64], index: 0, kind: input, shape index: {}]
  %s1 = inlined_call_operand.hbm [shape: f32[2,16,64], index: 1, kind: output, shape index: {}]
  %s2 = sld [smem:[#allocation0]]
  $region41: #{tpu_custom_call.1} parent=0
    _
  %s4 = ssub.s32 1, %s2
  %s5 = scalar_select 0, %s4, %s2
  $region1: #{tpu_custom_call.1} parent=0
    #allocation2 [shape = 'u8[16384]{0}', space=vmem, size = 0x4000, scoped, tag = 'input window, operand 0']
    #allocation3 [shape = 's32[2]{0}', space=sflag, size = 0x8, scoped, tag = 'scoped memory for tpu_custom_call.1']
    #allocation4 [shape = 's32[2]{0}', space=sflag, size = 0x8, scoped, tag = 'scoped memory for tpu_custom_call.1']
    #allocation5 [shape = 'u8[16384]{0}', space=vmem, size = 0x4000, scoped, tag = 'output window, operand 0']
    %6 = vsyncpa [#allocation3], 0
    %s7 = scalar_lea.sflag [#allocation3], 1
    %8 = vsyncpa %s7, 0
    %9 = vsyncpa [#allocation4], 0
    %s10 = scalar_lea.sflag [#allocation4], 1
    %11 = vsyncpa %s10, 0
    loop: start=0, step=1, limit=4
    $region2: #{tpu_custom_call.1} parent=1 // loop_pre_header
      _
    $region3: #{tpu_custom_call.1} parent=1 // loop_header
      %s13 = sphi 0, %s17
      %p14 = scmp.ge.s32.totalorder %s13, 4
      %s20 = sphi 0, %s32
      %s21 = sphi 0, %s28
      %s22 = sphi 0, %s20
      %s23 = sphi 0, %s21
      %s24 = sphi 0, %s22
      %s25 = sphi 0, %s23
      %s37 = sphi 0, %s39
      %s40 = sphi 0, %s37
      %s41 = sphi 0, %s40
      %s57 = sphi 0, %s41
      %s65 = sphi 0, %s67
      %s68 = sphi 0, %s65
      %s69 = sphi 0, %s68
      %s85 = sphi 0, %s69
    $region4: #{tpu_custom_call.1} parent=1 // loop_header_branch
      %16 = sbr.rel (%p14) target = $region8
    $region5: #{tpu_custom_call.1} parent=1 // loop_body
      %s18 = ssub.s32 %s13, 1
      %s19 = ssub.s32 %s13, 2
      %s26 = sadd.s32 1, %s21
      %p27 = scmp.ge.s32.totalorder %s26, 1
      %s28 = scalar_select %p27, 0, %s26
      %s29 = sadd.s32 1, %s20
      %s30 = scalar_select %p27, %s29, %s20
      %p31 = scmp.ge.s32.totalorder %s30, 2
      %s32 = scalar_select %p31, 0, %s30
      %s33 = ssub.s32 %s20, %s32
      %s34 = ssub.s32 %s21, %s28
      %s35 = sor.u32 %s33, %s34
      %p36 = scmp.eq.s32.totalorder %s35, 0
      %s38 = sadd.s32 %s37, 1
      %s39 = scalar_select %p36, %s37, %s38
      %p42 = pneg %p36
      %p43 = scmp.eq.s32.totalorder %s13, 1
      %p44 = por %p42, %p43
      %p45 = scmp.ne.s32.totalorder %s37, %s40
      %p46 = scmp.eq.s32.totalorder %s13, 0
      %p47 = por %p45, %p46
      %p48 = scmp.ne.s32.totalorder %s37, %s40
      %p49 = scmp.eq.s32.totalorder %s18, 1
      %p50 = por %p48, %p49
      %p51 = scmp.ne.s32.totalorder %s40, %s41
      %p52 = scmp.eq.s32.totalorder %s18, 0
      %p53 = por %p51, %p52
      %p54 = scmp.ne.s32.totalorder %s40, %s41
      %p55 = scmp.eq.s32.totalorder %s19, 1
      %p56 = por %p54, %p55
      %p58 = scmp.ne.s32.totalorder %s41, %s57
      %p59 = scmp.eq.s32.totalorder %s19, 0
      %p60 = por %p58, %p59
      %s61 = ssub.s32 %s20, %s32
      %s62 = ssub.s32 %s21, %s28
      %s63 = sor.u32 %s61, %s62
      %p64 = scmp.eq.s32.totalorder %s63, 0
      %s66 = sadd.s32 %s65, 1
      %s67 = scalar_select %p64, %s65, %s66
      %p70 = pneg %p64
      %p71 = scmp.eq.s32.totalorder %s13, 1
      %p72 = por %p70, %p71
      %p73 = scmp.ne.s32.totalorder %s65, %s68
      %p74 = scmp.eq.s32.totalorder %s13, 0
      %p75 = por %p73, %p74
      %p76 = scmp.ne.s32.totalorder %s65, %s68
      %p77 = scmp.eq.s32.totalorder %s18, 1
      %p78 = por %p76, %p77
      %p79 = scmp.ne.s32.totalorder %s68, %s69
      %p80 = scmp.eq.s32.totalorder %s18, 0
      %p81 = por %p79, %p80
      %p82 = scmp.ne.s32.totalorder %s68, %s69
      %p83 = scmp.eq.s32.totalorder %s19, 1
      %p84 = por %p82, %p83
      %p86 = scmp.ne.s32.totalorder %s69, %s85
      %p87 = scmp.eq.s32.totalorder %s19, 0
      %p88 = por %p86, %p87
      %p89 = scmp.le.s32.totalorder 1, %s13
      %p90 = scmp.lt.s32.totalorder %s13, 3
      %p91 = pnand %p89, %p90
      %p92 = pneg %p91
      // Predicated region
      $region9: #{tpu_custom_call.1} parent=5 // pred_check
        _
      $region10: #{tpu_custom_call.1} parent=5 // pred_check_branch
        %94 = sbr.rel (%p91) target = $region12
      $region11: #{tpu_custom_call.1} parent=5 // pred_region
        %s95 = ssub.s32 %s13, 1
      $region12: #{tpu_custom_call.1} parent=5 // pred_fallthru
        _
      %p96 = scmp.lt.s32.totalorder %s13, 2
      // Predicated region
      $region13: #{tpu_custom_call.1} parent=5 // pred_check
        %p97 = pneg %p96
      $region14: #{tpu_custom_call.1} parent=5 // pred_check_branch
        %99 = sbr.rel (%p97) target = $region16
      $region15: #{tpu_custom_call.1} parent=5 // pred_region
        // Predicated region
        $region17: #{tpu_custom_call.1} parent=15 // pred_check
          %p100 = pneg %p47
        $region18: #{tpu_custom_call.1} parent=15 // pred_check_branch
          %102 = sbr.rel (%p100) target = $region20
        $region19: #{tpu_custom_call.1} parent=15 // pred_region
          %s103 = sand.u32 %s37, 1
          %s104 = scalar_lea.sflag [#allocation3], %s103
          %s105 = sand.u32 %s37, 1
          %s106 = smul.addr %s105, 16
          %s107 = scalar_lea.vmem [#allocation2], %s106
          %s109 = ssub.s32 256, 256
          %110 = vsyncadd %s104, %s109
          %s111 = smul.addr %s20, 2
          %s112 = sadd.s32 %s21, %s111
          %s113 = smul.addr %s112, 128
          %s114 = scalar_lea.hbm %s0, %s113
          %s115 = sshll.u32 %s107, 4
          %s116 = int_to_ptr.vmem [resolvable:$true] %s115
          %121 = dma.hbm_to_vmem [thread:$0]  %s114, 256, %s116, %s104, 128, 128, 8
        $region20: #{tpu_custom_call.1} parent=15 // pred_fallthru
          _
      $region16: #{tpu_custom_call.1} parent=5 // pred_fallthru
        _
      %p122 = scmp.le.s32.totalorder 1, %s13
      %p123 = scmp.lt.s32.totalorder %s13, 3
      %p124 = pnand %p122, %p123
      %p125 = pneg %p124
      // Predicated region
      $region21: #{tpu_custom_call.1} parent=5 // pred_check
        _
      $region22: #{tpu_custom_call.1} parent=5 // pred_check_branch
        %127 = sbr.rel (%p124) target = $region24
      $region23: #{tpu_custom_call.1} parent=5 // pred_region
        %s128 = ssub.s32 %s13, 1
        %s129 = sand.u32 %s40, 1
        %s130 = scalar_lea.sflag [#allocation3], %s129
        %s131 = sand.u32 %s40, 1
        %s132 = smul.addr %s131, 16
        %s133 = scalar_lea.vmem [#allocation2], %s132
        // Predicated region
        $region25: #{tpu_custom_call.1} parent=23 // pred_check
          %p134 = pneg %p53
        $region26: #{tpu_custom_call.1} parent=23 // pred_check_branch
          %136 = sbr.rel (%p134) target = $region28
        $region27: #{tpu_custom_call.1} parent=23 // pred_region
          %137 = dma.done %s130, 256
        $region28: #{tpu_custom_call.1} parent=23 // pred_fallthru
          _
        %s138 = sand.u32 %s40, 1
        %s139 = scalar_lea.sflag [#allocation3], %s138
        %s140 = sand.u32 %s40, 1
        %s141 = smul.addr %s140, 16
        %s142 = scalar_lea.vmem [#allocation2], %s141
        %p143 = pneg %p53
        %p144 = pneg %p50
        %p145 = pneg %p81
        %p146 = pneg %p78
        %s147 = sand.u32 %s68, 1
        %s148 = scalar_lea.sflag [#allocation4], %s147
        %s149 = sand.u32 %s68, 1
        %s150 = smul.addr %s149, 16
        %s151 = scalar_lea.vmem [#allocation5], %s150
        %v152 = vld [vmem:[%s133] sm:$0xff]
        %v153 = vld [vmem:[%s133 + $0x8] sm:$0xff]
        %v154 = vlaneseq
        %v155 = vshrl.u32 %v154, 7
        %v156 = vadd.s32 %v155, 8
        %v157 = vrot.slane %v152, 1
        %v158 = vrot.slane %v153, 1
        %vm159 = vcmp.lt.s32.totalorder %v155, 7
        %v160 = vsel %vm159, %v157, %v158
        %v161 = vsel %vm159, %v158, %v157
        %vm162 = vcmp.eq.s32.totalorder %v155, 15
        %vm163 = vcmp.eq.s32.totalorder %v156, 15
        %v164 = vsel %vm162, 1, 0
        %v165 = vsel %vm163, 1, 0
        %vm166 = vcmp.eq.s32.totalorder %v164, 1
        %vm167 = vcmp.eq.s32.totalorder %v165, 1
        %v168 = vsel %vm166, %v152, %v160
        %v169 = vsel %vm167, %v153, %v161
        %v170 = vsub.f32 %v168, %v152
        %v171 = vsub.f32 %v169, %v153
        %vm172 = vcmask 523264
        %173 = vst.msk [vmem:[%s151] sm:$0xff] %vm172, %v170
        %174 = vst.msk [vmem:[%s151 + $0x8] sm:$0xff] %vm172, %v171
        %s175 = sand.u32 %s68, 1
        %s176 = scalar_lea.sflag [#allocation4], %s175
        %s177 = sand.u32 %s68, 1
        %s178 = smul.addr %s177, 16
        %s179 = scalar_lea.vmem [#allocation5], %s178
        // Predicated region
        $region29: #{tpu_custom_call.1} parent=23 // pred_check
          %p180 = pneg %p78
        $region30: #{tpu_custom_call.1} parent=23 // pred_check_branch
          %182 = sbr.rel (%p180) target = $region32
        $region31: #{tpu_custom_call.1} parent=23 // pred_region
          %s184 = ssub.s32 256, 256
          %185 = vsyncadd %s176, %s184
          %s186 = smul.addr %s22, 2
          %s187 = sadd.s32 %s23, %s186
          %s188 = smul.addr %s187, 128
          %s189 = scalar_lea.hbm %s1, %s188
          %s190 = sshll.u32 %s179, 4
          %s191 = int_to_ptr.vmem [resolvable:$true] %s190
          %196 = dma.vmem_to_hbm [thread:$0]  %s191, 256, %s189, %s176, 128, 128, 8
        $region32: #{tpu_custom_call.1} parent=23 // pred_fallthru
          _
      $region24: #{tpu_custom_call.1} parent=5 // pred_fallthru
        _
      %p197 = scmp.le.s32.totalorder 2, %s13
      // Predicated region
      $region33: #{tpu_custom_call.1} parent=5 // pred_check
        %p198 = pneg %p197
      $region34: #{tpu_custom_call.1} parent=5 // pred_check_branch
        %200 = sbr.rel (%p198) target = $region36
      $region35: #{tpu_custom_call.1} parent=5 // pred_region
        %s201 = ssub.s32 %s13, 2
        // Predicated region
        $region37: #{tpu_custom_call.1} parent=35 // pred_check
          %p202 = pneg %p84
        $region38: #{tpu_custom_call.1} parent=35 // pred_check_branch
          %204 = sbr.rel (%p202) target = $region40
        $region39: #{tpu_custom_call.1} parent=35 // pred_region
          %s205 = sand.u32 %s69, 1
          %s206 = scalar_lea.sflag [#allocation4], %s205
          %s207 = sand.u32 %s69, 1
          %s208 = smul.addr %s207, 16
          %s209 = scalar_lea.vmem [#allocation5], %s208
          %210 = dma.done %s206, 256
        $region40: #{tpu_custom_call.1} parent=35 // pred_fallthru
          _
      $region36: #{tpu_custom_call.1} parent=5 // pred_fallthru
        _
    $region6: #{tpu_custom_call.1} parent=1 // loop_footer
      %s17 = sadd.s32 1, %s13
    $region7: #{tpu_custom_call.1} parent=1 // loop_footer_branch
      %12 = sbr.rel target = $region3
    $region8: #{tpu_custom_call.1} parent=1 // loop_exit
      _
    %211 = vsyncpa [#allocation3], 1
    %s212 = scalar_lea.sflag [#allocation3], 1
    %213 = vsyncpa %s212, 1
    %214 = vsyncpa [#allocation4], 1
    %s215 = scalar_lea.sflag [#allocation4], 1
    %216 = vsyncpa %s215, 1

</llo_original>
